<compile_context>
chip_gen: v7x
topology: tpu7x:2x2x1
jax: 0.10.0
libtpu: 0.0.40
codegen_flags: <defaults>
</compile_context>

<pallas_src>
import functools

import jax
import jax.numpy as jnp
from jax.experimental import pallas as pl
from jax.experimental.pallas import tpu as pltpu

_EPS = 1e-5


# ----------------------------------------------------------------------------- helpers


def _unpack_params(prm):
    """Slice the packed (8,128) parameter slab."""
    w1 = prm[0:4, 0:3]       # (4, 3)  linear1 weight (out, in)
    w2 = prm[0:5, 4:8]       # (5, 4)  linear2 weight (out, in)
    b2e = prm[0:5, 8:9]      # (5, 1)  W2 @ beta + b2 (beta folded in on host)
    g = prm[0:4, 9:10]       # (4, 1)  gamma
    return w1, w2, b2e, g


def _linear1(w1, x):
    # (4,3) @ (3,TN) as three VPU broadcast-FMAs.  b1 is omitted: it cancels exactly
    # under training-mode BatchNorm, and dropping it keeps zero-padded lanes at exactly 0
    # so the batch statistics need no masking.
    return (w1[:, 0:1] * x[0:1, :]
            + w1[:, 1:2] * x[1:2, :]
            + w1[:, 2:3] * x[2:3, :])            # (4, TN)


def _fold_and_emit(h, w2, b2e, g, mean, var):
    """Fold gamma*rstd and the mean subtraction into linear2 and emit (5, TN)."""
    # rsqrt only on the tiny (4,1) stats vector (EUP), never on the (*, TN) path.
    scale = g * jax.lax.rsqrt(var + _EPS)        # (4, 1)
    bias = b2e                                   # (5, 1)
    acc = None
    for k in range(4):
        c_k = w2[:, k:k + 1] * scale[k:k + 1, :]  # (5, 1)
        bias = bias - c_k * mean[k:k + 1, :]
        term = c_k * h[k:k + 1, :]                # (5, TN) broadcast-FMA
        acc = term if acc is None else acc + term
    return acc + bias


# ----------------------------------------------------------------------------- kernels


def _fused_single_kernel(x_ref, prm_ref, o_ref, *, n_valid):
    """Small-N fast path: one block, stats + normalize + emit in one body."""
    w1, w2, b2e, g = _unpack_params(prm_ref[...])
    h = _linear1(w1, x_ref[...])                             # (4, NP)
    inv_n = 1.0 / n_valid
    mean = jnp.sum(h, axis=1, keepdims=True) * inv_n         # (4, 1)
    var = jnp.sum(h * h, axis=1, keepdims=True) * inv_n - mean * mean
    o_ref[...] = _fold_and_emit(h, w2, b2e, g, mean, var)


def _two_pass_kernel(x_ref, prm_ref, o_ref, ssum_ref, ssq_ref, hcache_ref,
                     *, n_valid, tn, cache_h):
    """grid = (pass, batch_tile).  Pass 0: BN stats (+ optional h cache).  Pass 1: emit."""
    p = pl.program_id(0)      # 0 = stats pass, 1 = emit pass
    i = pl.program_id(1)      # batch tile
    nchunks = tn // 128

    w1, w2, b2e, g = _unpack_params(prm_ref[...])

    def compute_h():
        return _linear1(w1, x_ref[...])

    @pl.when(jnp.logical_and(p == 0, i == 0))
    def _init_stats():
        ssum_ref[...] = jnp.zeros_like(ssum_ref)
        ssq_ref[...] = jnp.zeros_like(ssq_ref)

    @pl.when(p == 0)
    def _accumulate_stats():
        h = compute_h()                                      # (4, TN)
        if cache_h:
            start = pl.multiple_of(i * tn, tn)
            hcache_ref[:, pl.ds(start, tn)] = h              # single-HBM-read path
        if nchunks <= 32:
            # Lane-wise partials: pure VPU adds in the hot loop; the cross-lane reduce
            # happens once per tile in the emit pass instead of here.
            psum = ssum_ref[...]
            psq = ssq_ref[...]
            for c in range(nchunks):
                chunk = h[:, c * 128:(c + 1) * 128]          # lane-aligned (4, 128)
                psum = psum + chunk
                psq = psq + chunk * chunk
            ssum_ref[...] = psum
            ssq_ref[...] = psq
        else:
            # Very wide tiles: avoid excessive unrolling, fold into lane 0.
            ssum_ref[:, 0:1] = ssum_ref[:, 0:1] + jnp.sum(h, axis=1, keepdims=True)
            ssq_ref[:, 0:1] = ssq_ref[:, 0:1] + jnp.sum(h * h, axis=1, keepdims=True)

    @pl.when(p == 1)
    def _emit_output():
        if cache_h:
            start = pl.multiple_of(i * tn, tn)
            h = hcache_ref[:, pl.ds(start, tn)]
        else:
            h = compute_h()
        inv_n = 1.0 / n_valid
        mean = jnp.sum(ssum_ref[...], axis=1, keepdims=True) * inv_n    # (4, 1)
        var = jnp.sum(ssq_ref[...], axis=1, keepdims=True) * inv_n - mean * mean
        o_ref[...] = _fold_and_emit(h, w2, b2e, g, mean, var)


# ----------------------------------------------------------------------------- wrapper


def _pack_params(w1, gamma, beta, w2, b2):
    w1k = w1.astype(jnp.float32)
    w2k = w2.astype(jnp.float32)
    b2e = w2k @ beta.astype(jnp.float32) + b2.astype(jnp.float32)       # beta folded in
    prm = jnp.zeros((8, 128), jnp.float32)
    prm = prm.at[0:4, 0:3].set(w1k)
    prm = prm.at[0:5, 4:8].set(w2k)
    prm = prm.at[0:5, 8].set(b2e)
    prm = prm.at[0:4, 9].set(gamma.astype(jnp.float32))
    return prm


def _vmem_capacity_bytes():
    try:
        return int(pltpu.get_tpu_info().vmem_capacity_bytes)
    except Exception:
        return 64 * 1024 * 1024   # conservative (v7x per-core VMEM)


def model_forward(x, params, *, tile_n=2048, small_path_max=32768, force_no_cache=False):
    """x: (N, 3) float32 -> (N, 5) float32 (training-mode BatchNorm semantics)."""
    w1, b1, gamma, beta, w2, b2 = params
    del b1  # cancels exactly under batch normalization (see _linear1 comment)
    n = x.shape[0]
    prm = _pack_params(w1, gamma, beta, w2, b2)
    vmem_cap = _vmem_capacity_bytes()
    mib = 1024 * 1024
    n128 = 128 * (-(-n // 128))

    # Note: the (N,3)->(3,N_pad) transpose/pad and the final (5,N)->(N,5) transpose are
    # kept so the wrapper matches the module's (N, features) interface; if the surrounding
    # graph can consume feature-major data, both can be dropped.
    if n128 <= small_path_max:
        # ---- small-N fast path: single block, no pass axis, no stats scratch ----
        n_pad = n128
        xt = jnp.pad(x.astype(jnp.float32).T, ((0, 0), (0, n_pad - n)))
        out = pl.pallas_call(
            functools.partial(_fused_single_kernel, n_valid=float(n)),
            out_shape=jax.ShapeDtypeStruct((5, n_pad), jnp.float32),
            grid_spec=pltpu.PrefetchScalarGridSpec(
                num_scalar_prefetch=0,
                grid=(1,),
                in_specs=[
                    pl.BlockSpec((3, n_pad), lambda i: (0, 0)),   # whole x slab
                    pl.BlockSpec((8, 128), lambda i: (0, 0)),     # packed params
                ],
                out_specs=pl.BlockSpec((5, n_pad), lambda i: (0, 0)),
            ),
            compiler_params=pltpu.CompilerParams(
                dimension_semantics=("arbitrary",),
                vmem_limit_bytes=min(vmem_cap - 2 * mib, 32 * mib),
            ),
        )(xt, prm)
        return out[:, :n].T

    # ---- large-N two-pass path: grid = (pass, batch_tile) ----
    tn = max(128, 128 * (tile_n // 128))
    n_pad = tn * (-(-n // tn))
    num_tiles = n_pad // tn
    xt = jnp.pad(x.astype(jnp.float32).T, ((0, 0), (0, n_pad - n)))

    # h cache (single HBM read of x) gated on per-chip VMEM budget:
    # (4, n_pad) f32 scratch is sublane-padded to 8 rows -> 32 B/sample.
    cache_bytes = 8 * n_pad * 4
    cache_h = (not force_no_cache) and (cache_bytes <= vmem_cap - 12 * mib)
    hcache_shape = (4, n_pad) if cache_h else (4, 128)   # tiny dummy when not caching
    if cache_h:
        # Pass 1 keeps requesting block 0 -> already resident, no second HBM read of x.
        x_index_map = lambda p, i: (0, (1 - p) * i)
    else:
        x_index_map = lambda p, i: (0, i)

    vmem_limit = min(vmem_cap - 2 * mib,
                     (cache_bytes if cache_h else 0) + 32 * mib)

    kernel = functools.partial(_two_pass_kernel, n_valid=float(n), tn=tn, cache_h=cache_h)

    out = pl.pallas_call(
        kernel,
        out_shape=jax.ShapeDtypeStruct((5, n_pad), jnp.float32),
        grid_spec=pltpu.PrefetchScalarGridSpec(
            num_scalar_prefetch=0,
            grid=(2, num_tiles),                                   # (pass, batch tile)
            in_specs=[
                pl.BlockSpec((3, tn), x_index_map),                # x tiles (pipelined)
                pl.BlockSpec((8, 128), lambda p, i: (0, 0)),       # packed params, resident
            ],
            # p*i parks the output buffer on block 0 during the stats pass (index never
            # changes there -> no garbage writeback), then walks the tiles in pass 1.
            out_specs=pl.BlockSpec((5, tn), lambda p, i: (0, p * i)),
            scratch_shapes=[
                pltpu.VMEM((4, 128), jnp.float32),   # lane-wise partial sum(h)
                pltpu.VMEM((4, 128), jnp.float32),   # lane-wise partial sum(h*h)
                pltpu.VMEM(hcache_shape, jnp.float32),   # h cache (or dummy)
            ],
        ),
        # Pass axis and the BN-stats reduction across tiles are both sequential.
        # TODO(synk): on v7x, split the batch tiles across the two TensorCores (either
        # pl.core_map with per-core partial stats + core_barrier, or two pallas_calls with
        # a "parallel" tile axis) to use both HBM pipes.
        compiler_params=pltpu.CompilerParams(
            dimension_semantics=("arbitrary", "arbitrary"),
            vmem_limit_bytes=int(vmem_limit),
        ),
    )(xt, prm)
    return out[:, :n].T


# ----------------------------------------------------------------------------- reference / test


def init_params(key):
    """PyTorch-layout parameters (weights are (out, in))."""
    k1, k2, k3, k4, k5, k6 = jax.random.split(key, 6)
    lim1 = 1.0 / jnp.sqrt(3.0)
    w1 = jax.random.uniform(k1, (4, 3), jnp.float32, -lim1, lim1)
    b1 = jax.random.uniform(k2, (4,), jnp.float32, -lim1, lim1)
    # PyTorch defaults are gamma=1, beta=0; randomized to exercise the affine folding.
    gamma = 1.0 + 0.1 * jax.random.normal(k5, (4,), jnp.float32)
    beta = 0.1 * jax.random.normal(k6, (4,), jnp.float32)
    lim2 = 1.0 / jnp.sqrt(4.0)
    w2 = jax.random.uniform(k3, (5, 4), jnp.float32, -lim2, lim2)
    b2 = jax.random.uniform(k4, (5,), jnp.float32, -lim2, lim2)
    return (w1, b1, gamma, beta, w2, b2)


def reference_forward(x, params):
    """Pure-JAX reference matching the PyTorch module (training-mode BN)."""
    w1, b1, gamma, beta, w2, b2 = params
    h = x @ w1.T + b1
    mean = jnp.mean(h, axis=0)
    var = jnp.mean((h - mean) ** 2, axis=0)          # biased
    y = (h - mean) / jnp.sqrt(var + _EPS) * gamma + beta
    return y @ w2.T + b2


def _check(out, ref):
    assert out.shape == ref.shape
    assert jnp.allclose(out, ref, atol=5e-5, rtol=5e-5), float(jnp.max(jnp.abs(out - ref)))


if __name__ == "__main__":
    key = jax.random.PRNGKey(0)
    kx, kp, kx2, kx3 = jax.random.split(key, 4)
    params = init_params(kp)

    # Small shape consistent with the module: batch=8, in_features=3 (fast path).
    x = jax.random.normal(kx, (8, 3), jnp.float32)
    out = jax.block_until_ready(model_forward(x, params))
    _check(out, reference_forward(x, params))

    # Non-multiple-of-128 batch to exercise padded lanes on the fast path.
    x2 = jax.random.normal(kx2, (777, 3), jnp.float32)
    out2 = jax.block_until_ready(model_forward(x2, params))
    _check(out2, reference_forward(x2, params))

    # Force the two-pass grid path (with VMEM h-cache) on a small-but-multi-tile batch.
    x3 = jax.random.normal(kx3, (1900, 3), jnp.float32)
    out3 = jax.block_until_ready(
        model_forward(x3, params, tile_n=512, small_path_max=0))
    _check(out3, reference_forward(x3, params))

    # Same shape, forcing the no-cache fallback (the path used beyond the VMEM budget).
    out4 = jax.block_until_ready(
        model_forward(x3, params, tile_n=512, small_path_max=0, force_no_cache=True))
    _check(out4, reference_forward(x3, params))

    # TODO(synk): PyTorch training-mode BatchNorm1d also updates running_mean/running_var
    # (unbiased); only the forward output is reproduced here.
    print("KERNEL_OK")
</pallas_src>

<mosaic_0001>
module attributes {stable_mosaic.version = 11 : i64} {
  func.func @_fused_single_kernel(%arg0: i32, %arg1: memref<3x128xf32, #tpu.memory_space<vmem>>, %arg2: memref<8x128xf32, #tpu.memory_space<vmem>>, %arg3: memref<5x128xf32, #tpu.memory_space<vmem>>) attributes {dimension_semantics = [#tpu.dimension_semantics<arbitrary>], iteration_bounds = array<i64: 1>, scalar_prefetch = 0 : i64, scratch_operands = 0 : i64, tpu.core_type = #tpu.core_type<tc>, window_params = [{pipeline_mode = #tpu.pipeline_mode<synchronous>, transform_indices = @transform_0, window_bounds = array<i64: 3, 128>}, {pipeline_mode = #tpu.pipeline_mode<synchronous>, transform_indices = @transform_1, window_bounds = array<i64: 8, 128>}, {pipeline_mode = #tpu.pipeline_mode<synchronous>, transform_indices = @transform_2, window_bounds = array<i64: 5, 128>}]} {
    %c0 = arith.constant 0 : index
    %c0_0 = arith.constant 0 : index
    %0 = vector.load %arg2[%c0, %c0_0] : memref<8x128xf32, #tpu.memory_space<vmem>>, vector<8x128xf32>
    %1 = vector.extract_strided_slice %0 {offsets = [0, 0], sizes = [4, 3], strides = [1, 1]} : vector<8x128xf32> to vector<4x3xf32>
    %2 = vector.extract_strided_slice %0 {offsets = [0, 4], sizes = [5, 4], strides = [1, 1]} : vector<8x128xf32> to vector<5x4xf32>
    %3 = vector.extract_strided_slice %0 {offsets = [0, 8], sizes = [5, 1], strides = [1, 1]} : vector<8x128xf32> to vector<5x1xf32>
    %4 = vector.extract_strided_slice %0 {offsets = [0, 9], sizes = [4, 1], strides = [1, 1]} : vector<8x128xf32> to vector<4x1xf32>
    %c0_1 = arith.constant 0 : index
    %c0_2 = arith.constant 0 : index
    %5 = vector.load %arg1[%c0_1, %c0_2] : memref<3x128xf32, #tpu.memory_space<vmem>>, vector<3x128xf32>
    %6 = vector.extract_strided_slice %1 {offsets = [0, 0], sizes = [4, 1], strides = [1, 1]} : vector<4x3xf32> to vector<4x1xf32>
    %7 = vector.extract_strided_slice %5 {offsets = [0, 0], sizes = [1, 128], strides = [1, 1]} : vector<3x128xf32> to vector<1x128xf32>
    %8 = vector.broadcast %6 : vector<4x1xf32> to vector<4x128xf32>
    %9 = vector.broadcast %7 : vector<1x128xf32> to vector<4x128xf32>
    %10 = arith.mulf %8, %9 : vector<4x128xf32>
    %11 = vector.extract_strided_slice %1 {offsets = [0, 1], sizes = [4, 1], strides = [1, 1]} : vector<4x3xf32> to vector<4x1xf32>
    %12 = vector.extract_strided_slice %5 {offsets = [1, 0], sizes = [1, 128], strides = [1, 1]} : vector<3x128xf32> to vector<1x128xf32>
    %13 = vector.broadcast %11 : vector<4x1xf32> to vector<4x128xf32>
    %14 = vector.broadcast %12 : vector<1x128xf32> to vector<4x128xf32>
    %15 = arith.mulf %13, %14 : vector<4x128xf32>
    %16 = arith.addf %10, %15 : vector<4x128xf32>
    %17 = vector.extract_strided_slice %1 {offsets = [0, 2], sizes = [4, 1], strides = [1, 1]} : vector<4x3xf32> to vector<4x1xf32>
    %18 = vector.extract_strided_slice %5 {offsets = [2, 0], sizes = [1, 128], strides = [1, 1]} : vector<3x128xf32> to vector<1x128xf32>
    %19 = vector.broadcast %17 : vector<4x1xf32> to vector<4x128xf32>
    %20 = vector.broadcast %18 : vector<1x128xf32> to vector<4x128xf32>
    %21 = arith.mulf %19, %20 : vector<4x128xf32>
    %22 = arith.addf %16, %21 : vector<4x128xf32>
    %cst = arith.constant dense<0.000000e+00> : vector<4xf32>
    %23 = vector.multi_reduction <add>, %22, %cst [1] : vector<4x128xf32> to vector<4xf32>
    %24 = vector.shape_cast %23 : vector<4xf32> to vector<4x1xf32>
    %cst_3 = arith.constant 1.250000e-01 : f32
    %25 = vector.broadcast %cst_3 : f32 to vector<4x1xf32>
    %26 = arith.mulf %24, %25 : vector<4x1xf32>
    %27 = arith.mulf %22, %22 : vector<4x128xf32>
    %cst_4 = arith.constant dense<0.000000e+00> : vector<4xf32>
    %28 = vector.multi_reduction <add>, %27, %cst_4 [1] : vector<4x128xf32> to vector<4xf32>
    %29 = vector.shape_cast %28 : vector<4xf32> to vector<4x1xf32>
    %cst_5 = arith.constant 1.250000e-01 : f32
    %30 = vector.broadcast %cst_5 : f32 to vector<4x1xf32>
    %31 = arith.mulf %29, %30 : vector<4x1xf32>
    %32 = arith.mulf %26, %26 : vector<4x1xf32>
    %33 = arith.subf %31, %32 : vector<4x1xf32>
    %cst_6 = arith.constant 9.99999974E-6 : f32
    %34 = vector.broadcast %cst_6 : f32 to vector<4x1xf32>
    %35 = arith.addf %33, %34 : vector<4x1xf32>
    %36 = math.rsqrt %35 : vector<4x1xf32>
    %37 = arith.mulf %4, %36 : vector<4x1xf32>
    %38 = vector.extract_strided_slice %2 {offsets = [0, 0], sizes = [5, 1], strides = [1, 1]} : vector<5x4xf32> to vector<5x1xf32>
    %39 = vector.extract_strided_slice %37 {offsets = [0, 0], sizes = [1, 1], strides = [1, 1]} : vector<4x1xf32> to vector<1x1xf32>
    %40 = vector.broadcast %39 : vector<1x1xf32> to vector<5x1xf32>
    %41 = arith.mulf %38, %40 : vector<5x1xf32>
    %42 = vector.extract_strided_slice %26 {offsets = [0, 0], sizes = [1, 1], strides = [1, 1]} : vector<4x1xf32> to vector<1x1xf32>
    %43 = vector.broadcast %42 : vector<1x1xf32> to vector<5x1xf32>
    %44 = arith.mulf %41, %43 : vector<5x1xf32>
    %45 = arith.subf %3, %44 : vector<5x1xf32>
    %46 = vector.extract_strided_slice %22 {offsets = [0, 0], sizes = [1, 128], strides = [1, 1]} : vector<4x128xf32> to vector<1x128xf32>
    %47 = vector.broadcast %41 : vector<5x1xf32> to vector<5x128xf32>
    %48 = vector.broadcast %46 : vector<1x128xf32> to vector<5x128xf32>
    %49 = arith.mulf %47, %48 : vector<5x128xf32>
    %50 = vector.extract_strided_slice %2 {offsets = [0, 1], sizes = [5, 1], strides = [1, 1]} : vector<5x4xf32> to vector<5x1xf32>
    %51 = vector.extract_strided_slice %37 {offsets = [1, 0], sizes = [1, 1], strides = [1, 1]} : vector<4x1xf32> to vector<1x1xf32>
    %52 = vector.broadcast %51 : vector<1x1xf32> to vector<5x1xf32>
    %53 = arith.mulf %50, %52 : vector<5x1xf32>
    %54 = vector.extract_strided_slice %26 {offsets = [1, 0], sizes = [1, 1], strides = [1, 1]} : vector<4x1xf32> to vector<1x1xf32>
    %55 = vector.broadcast %54 : vector<1x1xf32> to vector<5x1xf32>
    %56 = arith.mulf %53, %55 : vector<5x1xf32>
    %57 = arith.subf %45, %56 : vector<5x1xf32>
    %58 = vector.extract_strided_slice %22 {offsets = [1, 0], sizes = [1, 128], strides = [1, 1]} : vector<4x128xf32> to vector<1x128xf32>
    %59 = vector.broadcast %53 : vector<5x1xf32> to vector<5x128xf32>
    %60 = vector.broadcast %58 : vector<1x128xf32> to vector<5x128xf32>
    %61 = arith.mulf %59, %60 : vector<5x128xf32>
    %62 = arith.addf %49, %61 : vector<5x128xf32>
    %63 = vector.extract_strided_slice %2 {offsets = [0, 2], sizes = [5, 1], strides = [1, 1]} : vector<5x4xf32> to vector<5x1xf32>
    %64 = vector.extract_strided_slice %37 {offsets = [2, 0], sizes = [1, 1], strides = [1, 1]} : vector<4x1xf32> to vector<1x1xf32>
    %65 = vector.broadcast %64 : vector<1x1xf32> to vector<5x1xf32>
    %66 = arith.mulf %63, %65 : vector<5x1xf32>
    %67 = vector.extract_strided_slice %26 {offsets = [2, 0], sizes = [1, 1], strides = [1, 1]} : vector<4x1xf32> to vector<1x1xf32>
    %68 = vector.broadcast %67 : vector<1x1xf32> to vector<5x1xf32>
    %69 = arith.mulf %66, %68 : vector<5x1xf32>
    %70 = arith.subf %57, %69 : vector<5x1xf32>
    %71 = vector.extract_strided_slice %22 {offsets = [2, 0], sizes = [1, 128], strides = [1, 1]} : vector<4x128xf32> to vector<1x128xf32>
    %72 = vector.broadcast %66 : vector<5x1xf32> to vector<5x128xf32>
    %73 = vector.broadcast %71 : vector<1x128xf32> to vector<5x128xf32>
    %74 = arith.mulf %72, %73 : vector<5x128xf32>
    %75 = arith.addf %62, %74 : vector<5x128xf32>
    %76 = vector.extract_strided_slice %2 {offsets = [0, 3], sizes = [5, 1], strides = [1, 1]} : vector<5x4xf32> to vector<5x1xf32>
    %77 = vector.extract_strided_slice %37 {offsets = [3, 0], sizes = [1, 1], strides = [1, 1]} : vector<4x1xf32> to vector<1x1xf32>
    %78 = vector.broadcast %77 : vector<1x1xf32> to vector<5x1xf32>
    %79 = arith.mulf %76, %78 : vector<5x1xf32>
    %80 = vector.extract_strided_slice %26 {offsets = [3, 0], sizes = [1, 1], strides = [1, 1]} : vector<4x1xf32> to vector<1x1xf32>
    %81 = vector.broadcast %80 : vector<1x1xf32> to vector<5x1xf32>
    %82 = arith.mulf %79, %81 : vector<5x1xf32>
    %83 = arith.subf %70, %82 : vector<5x1xf32>
    %84 = vector.extract_strided_slice %22 {offsets = [3, 0], sizes = [1, 128], strides = [1, 1]} : vector<4x128xf32> to vector<1x128xf32>
    %85 = vector.broadcast %79 : vector<5x1xf32> to vector<5x128xf32>
    %86 = vector.broadcast %84 : vector<1x128xf32> to vector<5x128xf32>
    %87 = arith.mulf %85, %86 : vector<5x128xf32>
    %88 = arith.addf %75, %87 : vector<5x128xf32>
    %89 = vector.broadcast %83 : vector<5x1xf32> to vector<5x128xf32>
    %90 = arith.addf %88, %89 : vector<5x128xf32>
    %c0_7 = arith.constant 0 : index
    %c0_8 = arith.constant 0 : index
    %91 = vector.load %arg3[%c0_7, %c0_8] : memref<5x128xf32, #tpu.memory_space<vmem>>, vector<5x128xf32>
    tpu.vector_store %arg3[%c0_7, %c0_8], %90 {strides = array<i32>} : memref<5x128xf32, #tpu.memory_space<vmem>>, vector<5x128xf32>,
    return
  }
  func.func @transform_0(%arg0: i32) -> (i32, i32) {
    %c0_i32 = arith.constant 0 : i32
    %c0_i32_0 = arith.constant 0 : i32
    %c0_i32_1 = arith.constant 0 : i32
    return %c0_i32, %c0_i32_0 : i32, i32
  }
  func.func @transform_1(%arg0: i32) -> (i32, i32) {
    %c0_i32 = arith.constant 0 : i32
    %c0_i32_0 = arith.constant 0 : i32
    %c0_i32_1 = arith.constant 0 : i32
    return %c0_i32, %c0_i32_0 : i32, i32
  }
  func.func @transform_2(%arg0: i32) -> (i32, i32) {
    %c0_i32 = arith.constant 0 : i32
    %c0_i32_0 = arith.constant 0 : i32
    %c0_i32_1 = arith.constant 0 : i32
    return %c0_i32, %c0_i32_0 : i32, i32
  }
}

</mosaic_0001>

<llo_original>
// kernel: tpu_custom_call.1
$region0: #{tpu_custom_call.1}
  #allocation0 [shape = 'u32[]', space=smem, size = 0x4, offset = 0x4, fixed_abs, tag = 'smem constant byte address 0x4 - core index']
  #allocation1 [shape = 'u32[144,128]{1,0:T(1,128)}', space=vmem, size = 0x12000, scoped, tag = 'internal scratch']
  %s0 = inlined_call_operand.hbm [shape: f32[3,128], index: 0, kind: input, shape index: {}]
  %s1 = inlined_call_operand.hbm [shape: f32[8,128], index: 1, kind: input, shape index: {}]
  %s2 = inlined_call_operand.hbm [shape: f32[5,128], index: 2, kind: output, shape index: {}]
  %s3 = sld [smem:[#allocation0]]
  $region26: #{tpu_custom_call.1} parent=0
    _
  %s5 = ssub.s32 1, %s3
  %s6 = scalar_select 0, %s5, %s3
  $region1: #{tpu_custom_call.1} parent=0
    #allocation2 [shape = 'u8[2048]{0}', space=vmem, size = 0x800, scoped, tag = 'input window, operand 0, single buffered']
    #allocation3 [shape = 's32[1]{0}', space=sflag, size = 0x4, scoped, tag = 'scoped memory for tpu_custom_call.1']
    #allocation4 [shape = 's32[1]{0}', space=sflag, size = 0x4, scoped, tag = 'scoped memory for tpu_custom_call.1']
    #allocation5 [shape = 'u8[4096]{0}', space=vmem, size = 0x1000, scoped, tag = 'input window, operand 1, single buffered']
    #allocation6 [shape = 's32[1]{0}', space=sflag, size = 0x4, scoped, tag = 'scoped memory for tpu_custom_call.1']
    #allocation7 [shape = 'u8[4096]{0}', space=vmem, size = 0x1000, scoped, tag = 'output window, operand 0, single buffered']
    %7 = vsyncpa [#allocation3], 0
    %8 = vsyncpa [#allocation6], 0
    %9 = vsyncpa [#allocation4], 0
    // Predicated region
    $region2: #{tpu_custom_call.1} parent=1 // pred_check
      _
    $region3: #{tpu_custom_call.1} parent=1 // pred_check_branch
      %11 = sbr.rel (0) target = $region5
    $region4: #{tpu_custom_call.1} parent=1 // pred_region
      %s13 = ssub.s32 64, 64
      %14 = vsyncadd [#allocation3], %s13
      %s16 = sshll.u32 [#allocation2], 4
      %s17 = int_to_ptr.vmem [resolvable:$true] %s16
      %19 = dma.hbm_to_vmem [thread:$0]  %s0, 64, %s17, [#allocation3]
    $region5: #{tpu_custom_call.1} parent=1 // pred_fallthru
      _
    // Predicated region
    $region6: #{tpu_custom_call.1} parent=1 // pred_check
      _
    $region7: #{tpu_custom_call.1} parent=1 // pred_check_branch
      %21 = sbr.rel (0) target = $region9
    $region8: #{tpu_custom_call.1} parent=1 // pred_region
      %s23 = ssub.s32 128, 128
      %24 = vsyncadd [#allocation6], %s23
      %s26 = sshll.u32 [#allocation5], 4
      %s27 = int_to_ptr.vmem [resolvable:$true] %s26
      %29 = dma.hbm_to_vmem [thread:$0]  %s1, 128, %s27, [#allocation6]
    $region9: #{tpu_custom_call.1} parent=1 // pred_fallthru
      _
    // Predicated region
    $region10: #{tpu_custom_call.1} parent=1 // pred_check
      _
    $region11: #{tpu_custom_call.1} parent=1 // pred_check_branch
      %31 = sbr.rel (0) target = $region13
    $region12: #{tpu_custom_call.1} parent=1 // pred_region
      %32 = dma.done [#allocation3], 64
    $region13: #{tpu_custom_call.1} parent=1 // pred_fallthru
      _
    // Predicated region
    $region14: #{tpu_custom_call.1} parent=1 // pred_check
      _
    $region15: #{tpu_custom_call.1} parent=1 // pred_check_branch
      %34 = sbr.rel (0) target = $region17
    $region16: #{tpu_custom_call.1} parent=1 // pred_region
      %35 = dma.done [#allocation6], 128
    $region17: #{tpu_custom_call.1} parent=1 // pred_fallthru
      _
    %v36 = vld [vmem:[#allocation5] sm:$0xff]
    %v37 = vld [vmem:[#allocation2] sm:$0x7]
    %39 = vset.pattern.permute.xlu0 0
    %40 = vperm.xlu0 %39, %v36
    %v41 = vpop.permute.xlu0 %40
    %v43 = vlaneseq
    %v44 = vshrl.u32 %v43, 7
    %v45 = vsub.s32 0, %v44
    %v46 = vrot.slane %v37, %v45
    %v47 = vmul.f32 %v41, %v46
    %48 = vset.pattern.permute.xlu0 1
    %49 = vperm.xlu0 %48, %v36
    %v50 = vpop.permute.xlu0 %49
    %v52 = vlaneseq
    %v53 = vshrl.u32 %v52, 7
    %v54 = vsub.s32 1, %v53
    %v55 = vrot.slane %v37, %v54
    %v56 = vmul.f32 %v50, %v55
    %v57 = vadd.f32 %v47, %v56
    %58 = vset.pattern.permute.xlu0 2
    %59 = vperm.xlu0 %58, %v36
    %v60 = vpop.permute.xlu0 %59
    %v62 = vlaneseq
    %v63 = vshrl.u32 %v62, 7
    %v64 = vsub.s32 2, %v63
    %v65 = vrot.slane %v37, %v64
    %v66 = vmul.f32 %v60, %v65
    %v67 = vadd.f32 %v57, %v66
    %vm68 = vcmask 1043456
    %v69 = vsel %vm68, %v67, 0.0
    %70 = vadd.xlane.f32.xlu0 %v69
    %v71 = vpop.xlane.xlu0 %70
    %v72 = vmul.f32 %v71, 0.125
    %v73 = vmul.f32 %v67, %v67
    %v74 = vsel %vm68, %v73, 0.0
    %75 = vadd.xlane.f32.xlu0 %v74
    %v76 = vpop.xlane.xlu0 %75
    %v77 = vmul.f32 %v76, 0.125
    %v78 = vmul.f32 %v72, %v72
    %v79 = vsub.f32 %v77, %v78
    %v80 = vadd.f32 %v79, 1e-05
    %v81 = vrsqrt.pop %v80
    %v82 = vmul.f32 %v36, %v81
    %v83 = vlaneseq
    %v84 = vshrl.u32 %v83, 7
    %v85 = vsub.s32 0, %v84
    %v86 = vrot.slane %v82, %v85
    %88 = vrot.lane.b32.xlu0 %v86, 123
    %v89 = vpop.permute.xlu0 %88
    %v91 = vmul.f32 %v36, %v89
    %v92 = vlaneseq
    %v93 = vshrl.u32 %v92, 7
    %v94 = vsub.s32 0, %v93
    %v95 = vrot.slane %v72, %v94
    %v96 = vmul.f32 %v91, %v95
    %98 = vrot.lane.b32.xlu0 %v96, 4
    %v99 = vpop.permute.xlu0 %98
    %v101 = vsub.f32 %v36, %v99
    %103 = vset.pattern.permute.xlu0 4
    %104 = vperm.xlu0 %103, %v91
    %v105 = vpop.permute.xlu0 %104
    %v107 = vlaneseq
    %v108 = vshrl.u32 %v107, 7
    %v109 = vsub.s32 0, %v108
    %v110 = vrot.slane %v67, %v109
    %v111 = vmul.f32 %v105, %v110
    %v112 = vlaneseq
    %v113 = vshrl.u32 %v112, 7
    %v114 = vsub.s32 1, %v113
    %v115 = vrot.slane %v82, %v114
    %117 = vrot.lane.b32.xlu0 %v115, 124
    %v118 = vpop.permute.xlu0 %117
    %v120 = vmul.f32 %v36, %v118
    %v121 = vlaneseq
    %v122 = vshrl.u32 %v121, 7
    %v123 = vsub.s32 1, %v122
    %v124 = vrot.slane %v72, %v123
    %v125 = vmul.f32 %v120, %v124
    %127 = vrot.lane.b32.xlu0 %v125, 3
    %v128 = vpop.permute.xlu0 %127
    %v130 = vsub.f32 %v101, %v128
    %132 = vset.pattern.permute.xlu0 5
    %133 = vperm.xlu0 %132, %v120
    %v134 = vpop.permute.xlu0 %133
    %v136 = vlaneseq
    %v137 = vshrl.u32 %v136, 7
    %v138 = vsub.s32 1, %v137
    %v139 = vrot.slane %v67, %v138
    %v140 = vmul.f32 %v134, %v139
    %v141 = vadd.f32 %v111, %v140
    %v142 = vlaneseq
    %v143 = vshrl.u32 %v142, 7
    %v144 = vsub.s32 2, %v143
    %v145 = vrot.slane %v82, %v144
    %147 = vrot.lane.b32.xlu0 %v145, 125
    %v148 = vpop.permute.xlu0 %147
    %v150 = vmul.f32 %v36, %v148
    %v151 = vlaneseq
    %v152 = vshrl.u32 %v151, 7
    %v153 = vsub.s32 2, %v152
    %v154 = vrot.slane %v72, %v153
    %v155 = vmul.f32 %v150, %v154
    %157 = vrot.lane.b32.xlu0 %v155, 2
    %v158 = vpop.permute.xlu0 %157
    %v160 = vsub.f32 %v130, %v158
    %162 = vset.pattern.permute.xlu0 6
    %163 = vperm.xlu0 %162, %v150
    %v164 = vpop.permute.xlu0 %163
    %v166 = vlaneseq
    %v167 = vshrl.u32 %v166, 7
    %v168 = vsub.s32 2, %v167
    %v169 = vrot.slane %v67, %v168
    %v170 = vmul.f32 %v164, %v169
    %v171 = vadd.f32 %v141, %v170
    %v172 = vlaneseq
    %v173 = vshrl.u32 %v172, 7
    %v174 = vsub.s32 3, %v173
    %v175 = vrot.slane %v82, %v174
    %177 = vrot.lane.b32.xlu0 %v175, 126
    %v178 = vpop.permute.xlu0 %177
    %v180 = vmul.f32 %v36, %v178
    %v181 = vlaneseq
    %v182 = vshrl.u32 %v181, 7
    %v183 = vsub.s32 3, %v182
    %v184 = vrot.slane %v72, %v183
    %v185 = vmul.f32 %v180, %v184
    %187 = vrot.lane.b32.xlu0 %v185, 1
    %v188 = vpop.permute.xlu0 %187
    %v190 = vsub.f32 %v160, %v188
    %192 = vset.pattern.permute.xlu0 7
    %193 = vperm.xlu0 %192, %v180
    %v194 = vpop.permute.xlu0 %193
    %v196 = vlaneseq
    %v197 = vshrl.u32 %v196, 7
    %v198 = vsub.s32 3, %v197
    %v199 = vrot.slane %v67, %v198
    %v200 = vmul.f32 %v194, %v199
    %v201 = vadd.f32 %v171, %v200
    %203 = vset.pattern.permute.xlu0 8
    %204 = vperm.xlu0 %203, %v190
    %v205 = vpop.permute.xlu0 %204
    %v207 = vadd.f32 %v201, %v205
    %208 = vst [vmem:[#allocation7] sm:$0x1f] %v207
    // Predicated region
    $region18: #{tpu_custom_call.1} parent=1 // pred_check
      _
    $region19: #{tpu_custom_call.1} parent=1 // pred_check_branch
      %210 = sbr.rel (0) target = $region21
    $region20: #{tpu_custom_call.1} parent=1 // pred_region
      %s212 = ssub.s32 128, 128
      %213 = vsyncadd [#allocation4], %s212
      %s215 = sshll.u32 [#allocation7], 4
      %s216 = int_to_ptr.vmem [resolvable:$true] %s215
      %218 = dma.vmem_to_hbm [thread:$0]  %s216, 128, %s2, [#allocation4]
    $region21: #{tpu_custom_call.1} parent=1 // pred_fallthru
      _
    // Predicated region
    $region22: #{tpu_custom_call.1} parent=1 // pred_check
      _
    $region23: #{tpu_custom_call.1} parent=1 // pred_check_branch
      %220 = sbr.rel (0) target = $region25
    $region24: #{tpu_custom_call.1} parent=1 // pred_region
      %221 = dma.done [#allocation4], 128
    $region25: #{tpu_custom_call.1} parent=1 // pred_fallthru
      _
    %222 = vsyncpa [#allocation3], 1
    %223 = vsyncpa [#allocation6], 1
    %224 = vsyncpa [#allocation4], 1

</llo_original>
